<compile_context>
chip_gen: v7x
topology: tpu7x:2x2x1
jax: 0.10.0
libtpu: 0.0.40
codegen_flags: <defaults>
</compile_context>

<pallas_src>
import functools

import jax
import jax.numpy as jnp
from jax.experimental import pallas as pl
from jax.experimental.pallas import tpu as pltpu


def classifier_kernel(x_ref, t_ref, w1e_ref, w1t_ref, b1_ref, w2_ref, b2_ref, o_ref,
                      *, inv_hw):
    # x_ref : (TB, C*HW) bf16/f32     t_ref : (TB, 1) f32
    # w1e_ref: (C*HW, hidden)  (W1 x-rows, replicated HW times, same dtype as x)
    # w1t_ref: (1, hidden) f32        b1_ref: (1, hidden) f32
    # w2_ref : (hidden, out) f32      b2_ref: (1, out) f32
    # o_ref  : (TB, out) f32

    # Fused spatial-sum + first Linear: one native-dtype MXU pass, f32 accumulate.
    hx = jnp.dot(x_ref[...], w1e_ref[...], preferred_element_type=jnp.float32)
    # 1/(H*W) mean scale in f32, t column of concat([x_mean, t]) @ W1 as a VPU
    # broadcast (no K=1 MXU dot), bias, ReLU.
    h = jnp.maximum(hx * inv_hw + t_ref[...] * w1t_ref[...] + b1_ref[...], 0.0)

    # Tiny second layer: HIGHEST is essentially free at (hidden x out) scale.
    logits = jnp.dot(h, w2_ref[...], preferred_element_type=jnp.float32,
                     precision=jax.lax.Precision.HIGHEST) + b2_ref[...]

    # Numerically stable softmax; approx reciprocal rides the EUP slot.
    m = jnp.max(logits, axis=-1, keepdims=True)
    e = jnp.exp(logits - m)
    s = jnp.sum(e, axis=-1, keepdims=True)
    o_ref[...] = (e * pl.reciprocal(s, approx=True)).astype(o_ref.dtype)


def _padded_block_bytes(shape, dtype):
    """VMEM footprint of one buffer of a block, padded to TPU tiling."""
    itemsize = jnp.dtype(dtype).itemsize
    dims = list(shape)
    dims[-1] = ((dims[-1] + 127) // 128) * 128
    if len(dims) >= 2:
        sub = 16 if itemsize == 2 else 8
        dims[-2] = ((dims[-2] + sub - 1) // sub) * sub
    n = 1
    for d in dims:
        n *= d
    return n * itemsize


def simple_classifier_forward(x, t, w1, b1, w2, b2, *,
                              x_dtype=jnp.bfloat16,
                              batch_tile_bytes=8 * 1024 * 1024):
    """x: (B, C, H, W), t: (B,).  w1: (C+1, hidden), b1: (hidden,),
    w2: (hidden, out), b2: (out,).  Matches the PyTorch simple_classifier forward."""
    B, C, H, W = x.shape
    HW = H * W
    CHW = C * HW
    hidden = w1.shape[1]
    out_dim = w2.shape[1]

    # Replicate each channel row of W1's x-part HW times so mean+Linear fuse into
    # one matmul (the 1/HW scale is applied in f32 inside the kernel).
    w1e = jnp.repeat(w1[:C, :].astype(jnp.float32), HW, axis=0).astype(x_dtype)  # (CHW, hidden)
    w1t = w1[C:, :].reshape(1, hidden).astype(jnp.float32)                        # (1, hidden)
    b1r = b1.reshape(1, hidden).astype(jnp.float32)
    w2f = w2.astype(jnp.float32)
    b2r = b2.reshape(1, out_dim).astype(jnp.float32)

    # Lane-major x: rows = batch (sublanes), C*H*W on the lane axis (free reshape).
    x2 = x.reshape(B, CHW).astype(x_dtype)
    t2 = t.reshape(B, 1).astype(jnp.float32)

    # Batch tile: ~batch_tile_bytes of x per block, multiple of 8 rows.
    row_bytes = CHW * jnp.dtype(x_dtype).itemsize
    tb = max(8, (batch_tile_bytes // max(row_bytes, 1)) // 8 * 8)
    if B >= 16:
        # Guarantee >= 2 grid steps so v7x's second TensorCore gets work.
        half = ((pl.cdiv(B, 2) + 7) // 8) * 8
        tb = min(tb, max(8, half))
    if tb >= B:
        tb = B                       # single full-extent tile (always layout-legal)
    num_tiles = pl.cdiv(B, tb)       # last tile may be partial; writeback is masked

    # VMEM budget from the actual (padded, double-buffered) blocks + headroom,
    # capped below v7x's 64 MiB physical VMEM.
    blocks = [
        ((tb, CHW), x_dtype),
        ((tb, 1), jnp.float32),
        ((CHW, hidden), x_dtype),
        ((1, hidden), jnp.float32),
        ((1, hidden), jnp.float32),
        ((hidden, out_dim), jnp.float32),
        ((1, out_dim), jnp.float32),
        ((tb, out_dim), jnp.float32),
    ]
    needed = sum(2 * _padded_block_bytes(s, d) for s, d in blocks)
    vmem_limit = min(max(needed + (4 << 20), 16 << 20), 56 << 20)

    const2 = lambda i: (0, 0)
    kernel = functools.partial(classifier_kernel, inv_hw=float(1.0 / HW))
    return pl.pallas_call(
        kernel,
        out_shape=jax.ShapeDtypeStruct((B, out_dim), jnp.float32),
        grid=(num_tiles,),
        in_specs=[
            pl.BlockSpec((tb, CHW), lambda i: (i, 0)),        # x  (pipelined)
            pl.BlockSpec((tb, 1), lambda i: (i, 0)),          # t  (pipelined)
            pl.BlockSpec((CHW, hidden), const2),              # W1 x-rows (resident)
            pl.BlockSpec((1, hidden), const2),                # W1 t-row  (resident)
            pl.BlockSpec((1, hidden), const2),                # b1        (resident)
            pl.BlockSpec((hidden, out_dim), const2),          # W2        (resident)
            pl.BlockSpec((1, out_dim), const2),               # b2        (resident)
        ],
        out_specs=pl.BlockSpec((tb, out_dim), lambda i: (i, 0)),
        compiler_params=pltpu.CompilerParams(
            dimension_semantics=("parallel",),                # megacore split on v7x
            vmem_limit_bytes=int(vmem_limit),
        ),
    )(x2, t2, w1e, w1t, b1r, w2f, b2r)


def init_params(key, x_input_dim, hidden_dim, output_dim):
    # deterministic synthetic init (not a checkpoint load); stored as (in, out)
    k1, k2, k3, k4 = jax.random.split(key, 4)
    in1 = x_input_dim + 1
    w1 = jax.random.normal(k1, (in1, hidden_dim), jnp.float32) / jnp.sqrt(in1)
    b1 = jax.random.normal(k2, (hidden_dim,), jnp.float32) * 0.01
    w2 = jax.random.normal(k3, (hidden_dim, output_dim), jnp.float32) / jnp.sqrt(hidden_dim)
    b2 = jax.random.normal(k4, (output_dim,), jnp.float32) * 0.01
    return w1, b1, w2, b2


if __name__ == "__main__":
    B, C, H, W = 2, 4, 16, 16
    hidden_dim, output_dim = 32, 8

    key = jax.random.PRNGKey(0)
    kx, kt, kp = jax.random.split(key, 3)
    x = jax.random.normal(kx, (B, C, H, W), jnp.float32)
    t = jax.random.uniform(kt, (B,), jnp.float32)
    w1, b1, w2, b2 = init_params(kp, C, hidden_dim, output_dim)

    out = simple_classifier_forward(x, t, w1, b1, w2, b2)
    out = jax.block_until_ready(out)

    # sanity: reference in plain JAX (f32); bf16 x/w1e + approx reciprocal -> loose tol
    xm = x.mean(axis=(-1, -2))
    xt = jnp.concatenate([xm, t[:, None]], axis=-1)
    ref = jax.nn.softmax(jnp.maximum(xt @ w1 + b1, 0.0) @ w2 + b2, axis=-1)
    assert out.shape == (B, output_dim)
    assert jnp.allclose(out, ref, atol=1e-2, rtol=1e-2)

    print("KERNEL_OK")
</pallas_src>

<mosaic_0001>
module attributes {stable_mosaic.version = 11 : i64} {
  func.func @classifier_kernel(%arg0: i32, %arg1: memref<2x1024xbf16, #tpu.memory_space<vmem>>, %arg2: memref<2x1xf32, #tpu.memory_space<vmem>>, %arg3: memref<1024x32xbf16, #tpu.memory_space<vmem>>, %arg4: memref<1x32xf32, #tpu.memory_space<vmem>>, %arg5: memref<1x32xf32, #tpu.memory_space<vmem>>, %arg6: memref<32x8xf32, #tpu.memory_space<vmem>>, %arg7: memref<1x8xf32, #tpu.memory_space<vmem>>, %arg8: memref<2x8xf32, #tpu.memory_space<vmem>>) attributes {dimension_semantics = [#tpu.dimension_semantics<parallel>], iteration_bounds = array<i64: 1>, scalar_prefetch = 0 : i64, scratch_operands = 0 : i64, tpu.core_type = #tpu.core_type<tc>, window_params = [{transform_indices = @transform_0, window_bounds = array<i64: 2, 1024>}, {transform_indices = @transform_1, window_bounds = array<i64: 2, 1>}, {pipeline_mode = #tpu.pipeline_mode<synchronous>, transform_indices = @transform_2, window_bounds = array<i64: 1024, 32>}, {pipeline_mode = #tpu.pipeline_mode<synchronous>, transform_indices = @transform_3, window_bounds = array<i64: 1, 32>}, {pipeline_mode = #tpu.pipeline_mode<synchronous>, transform_indices = @transform_4, window_bounds = array<i64: 1, 32>}, {pipeline_mode = #tpu.pipeline_mode<synchronous>, transform_indices = @transform_5, window_bounds = array<i64: 32, 8>}, {pipeline_mode = #tpu.pipeline_mode<synchronous>, transform_indices = @transform_6, window_bounds = array<i64: 1, 8>}, {transform_indices = @transform_7, window_bounds = array<i64: 2, 8>}]} {
    %c0 = arith.constant 0 : index
    %c0_0 = arith.constant 0 : index
    %0 = vector.load %arg1[%c0, %c0_0] : memref<2x1024xbf16, #tpu.memory_space<vmem>>, vector<2x1024xbf16>
    %c0_1 = arith.constant 0 : index
    %c0_2 = arith.constant 0 : index
    %1 = vector.load %arg3[%c0_1, %c0_2] : memref<1024x32xbf16, #tpu.memory_space<vmem>>, vector<1024x32xbf16>
    %cst = arith.constant dense<0.000000e+00> : vector<2x32xf32>
    %2 = tpu.matmul %0, %1, %cst {dimension_numbers = #tpu.dot_dimension_numbers<[1], [0], [0], [1], [0, 0, 1, 1], [], []>} : vector<2x1024xbf16>, vector<1024x32xbf16>, vector<2x32xf32> -> vector<2x32xf32>
    %cst_3 = arith.constant 3.906250e-03 : f32
    %3 = vector.broadcast %cst_3 : f32 to vector<2x32xf32>
    %4 = arith.mulf %2, %3 : vector<2x32xf32>
    %c0_4 = arith.constant 0 : index
    %c0_5 = arith.constant 0 : index
    %5 = vector.load %arg2[%c0_4, %c0_5] : memref<2x1xf32, #tpu.memory_space<vmem>>, vector<2x1xf32>
    %c0_6 = arith.constant 0 : index
    %c0_7 = arith.constant 0 : index
    %6 = vector.load %arg4[%c0_6, %c0_7] : memref<1x32xf32, #tpu.memory_space<vmem>>, vector<1x32xf32>
    %7 = vector.broadcast %5 : vector<2x1xf32> to vector<2x32xf32>
    %8 = vector.broadcast %6 : vector<1x32xf32> to vector<2x32xf32>
    %9 = arith.mulf %7, %8 : vector<2x32xf32>
    %10 = arith.addf %4, %9 : vector<2x32xf32>
    %c0_8 = arith.constant 0 : index
    %c0_9 = arith.constant 0 : index
    %11 = vector.load %arg5[%c0_8, %c0_9] : memref<1x32xf32, #tpu.memory_space<vmem>>, vector<1x32xf32>
    %12 = vector.broadcast %11 : vector<1x32xf32> to vector<2x32xf32>
    %13 = arith.addf %10, %12 : vector<2x32xf32>
    %cst_10 = arith.constant 0.000000e+00 : f32
    %14 = vector.broadcast %cst_10 : f32 to vector<2x32xf32>
    %15 = arith.maximumf %13, %14 : vector<2x32xf32>
    %c0_11 = arith.constant 0 : index
    %c0_12 = arith.constant 0 : index
    %16 = vector.load %arg6[%c0_11, %c0_12] : memref<32x8xf32, #tpu.memory_space<vmem>>, vector<32x8xf32>
    %cst_13 = arith.constant dense<0.000000e+00> : vector<2x8xf32>
    %17 = tpu.matmul %15, %16, %cst_13 {dimension_numbers = #tpu.dot_dimension_numbers<[1], [0], [0], [1], [0, 0, 1, 1], [], []>, precision = #tpu.contract_precision<fp32>} : vector<2x32xf32>, vector<32x8xf32>, vector<2x8xf32> -> vector<2x8xf32>
    %c0_14 = arith.constant 0 : index
    %c0_15 = arith.constant 0 : index
    %18 = vector.load %arg7[%c0_14, %c0_15] : memref<1x8xf32, #tpu.memory_space<vmem>>, vector<1x8xf32>
    %19 = vector.broadcast %18 : vector<1x8xf32> to vector<2x8xf32>
    %20 = arith.addf %17, %19 : vector<2x8xf32>
    %cst_16 = arith.constant dense<0xFF800000> : vector<2xf32>
    %21 = vector.multi_reduction <maximumf>, %20, %cst_16 [1] : vector<2x8xf32> to vector<2xf32>
    %22 = vector.shape_cast %21 : vector<2xf32> to vector<2x1xf32>
    %23 = vector.broadcast %22 : vector<2x1xf32> to vector<2x8xf32>
    %24 = arith.subf %20, %23 : vector<2x8xf32>
    %25 = math.exp %24 : vector<2x8xf32>
    %cst_17 = arith.constant dense<0.000000e+00> : vector<2xf32>
    %26 = vector.multi_reduction <add>, %25, %cst_17 [1] : vector<2x8xf32> to vector<2xf32>
    %27 = vector.shape_cast %26 : vector<2xf32> to vector<2x1xf32>
    %28 = tpu.reciprocal %27 {approx = true} : vector<2x1xf32> -> vector<2x1xf32>
    %29 = vector.broadcast %28 : vector<2x1xf32> to vector<2x8xf32>
    %30 = arith.mulf %25, %29 : vector<2x8xf32>
    %c0_18 = arith.constant 0 : index
    %c0_19 = arith.constant 0 : index
    %31 = vector.load %arg8[%c0_18, %c0_19] : memref<2x8xf32, #tpu.memory_space<vmem>>, vector<2x8xf32>
    tpu.vector_store %arg8[%c0_18, %c0_19], %30 {strides = array<i32>} : memref<2x8xf32, #tpu.memory_space<vmem>>, vector<2x8xf32>,
    return
  }
  func.func @transform_0(%arg0: i32) -> (i32, i32) {
    %c0_i32 = arith.constant 0 : i32
    %c0_i32_0 = arith.constant 0 : i32
    return %arg0, %c0_i32 : i32, i32
  }
  func.func @transform_1(%arg0: i32) -> (i32, i32) {
    %c0_i32 = arith.constant 0 : i32
    %c0_i32_0 = arith.constant 0 : i32
    return %arg0, %c0_i32 : i32, i32
  }
  func.func @transform_2(%arg0: i32) -> (i32, i32) {
    %c0_i32 = arith.constant 0 : i32
    %c0_i32_0 = arith.constant 0 : i32
    %c0_i32_1 = arith.constant 0 : i32
    return %c0_i32, %c0_i32_0 : i32, i32
  }
  func.func @transform_3(%arg0: i32) -> (i32, i32) {
    %c0_i32 = arith.constant 0 : i32
    %c0_i32_0 = arith.constant 0 : i32
    %c0_i32_1 = arith.constant 0 : i32
    return %c0_i32, %c0_i32_0 : i32, i32
  }
  func.func @transform_4(%arg0: i32) -> (i32, i32) {
    %c0_i32 = arith.constant 0 : i32
    %c0_i32_0 = arith.constant 0 : i32
    %c0_i32_1 = arith.constant 0 : i32
    return %c0_i32, %c0_i32_0 : i32, i32
  }
  func.func @transform_5(%arg0: i32) -> (i32, i32) {
    %c0_i32 = arith.constant 0 : i32
    %c0_i32_0 = arith.constant 0 : i32
    %c0_i32_1 = arith.constant 0 : i32
    return %c0_i32, %c0_i32_0 : i32, i32
  }
  func.func @transform_6(%arg0: i32) -> (i32, i32) {
    %c0_i32 = arith.constant 0 : i32
    %c0_i32_0 = arith.constant 0 : i32
    %c0_i32_1 = arith.constant 0 : i32
    return %c0_i32, %c0_i32_0 : i32, i32
  }
  func.func @transform_7(%arg0: i32) -> (i32, i32) {
    %c0_i32 = arith.constant 0 : i32
    %c0_i32_0 = arith.constant 0 : i32
    return %arg0, %c0_i32 : i32, i32
  }
}

</mosaic_0001>

<llo_original>
// kernel: tpu_custom_call.1
$region0: #{tpu_custom_call.1}
  #allocation0 [shape = 'u32[]', space=smem, size = 0x4, offset = 0x4, fixed_abs, tag = 'smem constant byte address 0x4 - core index']
  #allocation1 [shape = 'u32[144,128]{1,0:T(1,128)}', space=vmem, size = 0x12000, scoped, tag = 'internal scratch']
  %s0 = inlined_call_operand.vmem [shape: bf16[2,1024], index: 0, kind: input, shape index: {}]
  %s1 = inlined_call_operand.vmem [shape: f32[2,1], index: 1, kind: input, shape index: {}]
  %s2 = inlined_call_operand.vmem [shape: bf16[1024,32], index: 2, kind: input, shape index: {}]
  %s3 = inlined_call_operand.vmem [shape: f32[1,32], index: 3, kind: input, shape index: {}]
  %s4 = inlined_call_operand.vmem [shape: f32[1,32], index: 4, kind: input, shape index: {}]
  %s5 = inlined_call_operand.vmem [shape: f32[32,8], index: 5, kind: input, shape index: {}]
  %s6 = inlined_call_operand.vmem [shape: f32[1,8], index: 6, kind: input, shape index: {}]
  %s7 = inlined_call_operand.hbm [shape: f32[2,8], index: 7, kind: output, shape index: {}]
  %s8 = sld [smem:[#allocation0]]
  $region38: #{tpu_custom_call.1} parent=0
    _
  %s10 = ssub.s32 1, %s8
  %s11 = scalar_select 0, %s10, %s8
  $region1: #{tpu_custom_call.1} parent=0
    #allocation2 [shape = 'u8[1024]{0}', space=vmem, size = 0x400, scoped, tag = 'output window, operand 0, single buffered']
    #allocation3 [shape = 's32[1]{0}', space=sflag, size = 0x4, scoped, tag = 'scoped memory for tpu_custom_call.1']
    %12 = vsyncpa [#allocation3], 0
    // Predicated region
    $region2: #{tpu_custom_call.1} parent=1 // pred_check
      _
    $region3: #{tpu_custom_call.1} parent=1 // pred_check_branch
      %14 = sbr.rel (0) target = $region5
    $region4: #{tpu_custom_call.1} parent=1 // pred_region
      _
    $region5: #{tpu_custom_call.1} parent=1 // pred_fallthru
      _
    // Predicated region
    $region6: #{tpu_custom_call.1} parent=1 // pred_check
      _
    $region7: #{tpu_custom_call.1} parent=1 // pred_check_branch
      %16 = sbr.rel (0) target = $region9
    $region8: #{tpu_custom_call.1} parent=1 // pred_region
      _
    $region9: #{tpu_custom_call.1} parent=1 // pred_fallthru
      _
    // Predicated region
    $region10: #{tpu_custom_call.1} parent=1 // pred_check
      _
    $region11: #{tpu_custom_call.1} parent=1 // pred_check_branch
      %18 = sbr.rel (0) target = $region13
    $region12: #{tpu_custom_call.1} parent=1 // pred_region
      _
    $region13: #{tpu_custom_call.1} parent=1 // pred_fallthru
      _
    // Predicated region
    $region14: #{tpu_custom_call.1} parent=1 // pred_check
      _
    $region15: #{tpu_custom_call.1} parent=1 // pred_check_branch
      %20 = sbr.rel (0) target = $region17
    $region16: #{tpu_custom_call.1} parent=1 // pred_region
      _
    $region17: #{tpu_custom_call.1} parent=1 // pred_fallthru
      _
    // Predicated region
    $region18: #{tpu_custom_call.1} parent=1 // pred_check
      _
    $region19: #{tpu_custom_call.1} parent=1 // pred_check_branch
      %22 = sbr.rel (0) target = $region21
    $region20: #{tpu_custom_call.1} parent=1 // pred_region
      _
    $region21: #{tpu_custom_call.1} parent=1 // pred_fallthru
      _
    // Predicated region
    $region22: #{tpu_custom_call.1} parent=1 // pred_check
      _
    $region23: #{tpu_custom_call.1} parent=1 // pred_check_branch
      %24 = sbr.rel (0) target = $region25
    $region24: #{tpu_custom_call.1} parent=1 // pred_region
      _
    $region25: #{tpu_custom_call.1} parent=1 // pred_fallthru
      _
    // Predicated region
    $region26: #{tpu_custom_call.1} parent=1 // pred_check
      _
    $region27: #{tpu_custom_call.1} parent=1 // pred_check_branch
      %26 = sbr.rel (0) target = $region29
    $region28: #{tpu_custom_call.1} parent=1 // pred_region
      _
    $region29: #{tpu_custom_call.1} parent=1 // pred_fallthru
      _
    %v28 = vld [vmem:[%s0] sm:$0xff]
    %v29 = vld [vmem:[%s2] sm:$0xf]
    %v30 = vld [vmem:[%s2 + $0x4] sm:$0xf]
    %v31 = vld [vmem:[%s2 + $0x8] sm:$0xf]
    %v32 = vld [vmem:[%s2 + $0xc] sm:$0xf]
    %v33 = vld [vmem:[%s2 + $0x10] sm:$0xf]
    %v34 = vld [vmem:[%s2 + $0x14] sm:$0xf]
    %v35 = vld [vmem:[%s2 + $0x18] sm:$0xf]
    %v36 = vld [vmem:[%s2 + $0x1c] sm:$0xf]
    %v37 = vld [vmem:[%s2 + $0x20] sm:$0xf]
    %v38 = vld [vmem:[%s2 + $0x24] sm:$0xf]
    %v39 = vld [vmem:[%s2 + $0x28] sm:$0xf]
    %v40 = vld [vmem:[%s2 + $0x2c] sm:$0xf]
    %v41 = vld [vmem:[%s2 + $0x30] sm:$0xf]
    %v42 = vld [vmem:[%s2 + $0x34] sm:$0xf]
    %v43 = vld [vmem:[%s2 + $0x38] sm:$0xf]
    %v44 = vld [vmem:[%s2 + $0x3c] sm:$0xf]
    %v45 = vld [vmem:[%s2 + $0x40] sm:$0xf]
    %v46 = vld [vmem:[%s2 + $0x44] sm:$0xf]
    %v47 = vld [vmem:[%s2 + $0x48] sm:$0xf]
    %v48 = vld [vmem:[%s2 + $0x4c] sm:$0xf]
    %v49 = vld [vmem:[%s2 + $0x50] sm:$0xf]
    %v50 = vld [vmem:[%s2 + $0x54] sm:$0xf]
    %v51 = vld [vmem:[%s2 + $0x58] sm:$0xf]
    %v52 = vld [vmem:[%s2 + $0x5c] sm:$0xf]
    %v53 = vld [vmem:[%s2 + $0x60] sm:$0xf]
    %v54 = vld [vmem:[%s2 + $0x64] sm:$0xf]
    %v55 = vld [vmem:[%s2 + $0x68] sm:$0xf]
    %v56 = vld [vmem:[%s2 + $0x6c] sm:$0xf]
    %v57 = vld [vmem:[%s2 + $0x70] sm:$0xf]
    %v58 = vld [vmem:[%s2 + $0x74] sm:$0xf]
    %v59 = vld [vmem:[%s2 + $0x78] sm:$0xf]
    %v60 = vld [vmem:[%s2 + $0x7c] sm:$0xf]
    %v61 = vld [vmem:[%s2 + $0x80] sm:$0xf]
    %v62 = vld [vmem:[%s2 + $0x84] sm:$0xf]
    %v63 = vld [vmem:[%s2 + $0x88] sm:$0xf]
    %v64 = vld [vmem:[%s2 + $0x8c] sm:$0xf]
    %v65 = vld [vmem:[%s2 + $0x90] sm:$0xf]
    %v66 = vld [vmem:[%s2 + $0x94] sm:$0xf]
    %v67 = vld [vmem:[%s2 + $0x98] sm:$0xf]
    %v68 = vld [vmem:[%s2 + $0x9c] sm:$0xf]
    %v69 = vld [vmem:[%s2 + $0xa0] sm:$0xf]
    %v70 = vld [vmem:[%s2 + $0xa4] sm:$0xf]
    %v71 = vld [vmem:[%s2 + $0xa8] sm:$0xf]
    %v72 = vld [vmem:[%s2 + $0xac] sm:$0xf]
    %v73 = vld [vmem:[%s2 + $0xb0] sm:$0xf]
    %v74 = vld [vmem:[%s2 + $0xb4] sm:$0xf]
    %v75 = vld [vmem:[%s2 + $0xb8] sm:$0xf]
    %v76 = vld [vmem:[%s2 + $0xbc] sm:$0xf]
    %v77 = vld [vmem:[%s2 + $0xc0] sm:$0xf]
    %v78 = vld [vmem:[%s2 + $0xc4] sm:$0xf]
    %v79 = vld [vmem:[%s2 + $0xc8] sm:$0xf]
    %v80 = vld [vmem:[%s2 + $0xcc] sm:$0xf]
    %v81 = vld [vmem:[%s2 + $0xd0] sm:$0xf]
    %v82 = vld [vmem:[%s2 + $0xd4] sm:$0xf]
    %v83 = vld [vmem:[%s2 + $0xd8] sm:$0xf]
    %v84 = vld [vmem:[%s2 + $0xdc] sm:$0xf]
    %v85 = vld [vmem:[%s2 + $0xe0] sm:$0xf]
    %v86 = vld [vmem:[%s2 + $0xe4] sm:$0xf]
    %v87 = vld [vmem:[%s2 + $0xe8] sm:$0xf]
    %v88 = vld [vmem:[%s2 + $0xec] sm:$0xf]
    %v89 = vld [vmem:[%s2 + $0xf0] sm:$0xf]
    %v90 = vld [vmem:[%s2 + $0xf4] sm:$0xf]
    %v91 = vld [vmem:[%s2 + $0xf8] sm:$0xf]
    %v92 = vld [vmem:[%s2 + $0xfc] sm:$0xf]
    %v93 = vld [vmem:[%s2 + $0x100] sm:$0xf]
    %v94 = vld [vmem:[%s2 + $0x104] sm:$0xf]
    %v95 = vld [vmem:[%s2 + $0x108] sm:$0xf]
    %v96 = vld [vmem:[%s2 + $0x10c] sm:$0xf]
    %v97 = vld [vmem:[%s2 + $0x110] sm:$0xf]
    %v98 = vld [vmem:[%s2 + $0x114] sm:$0xf]
    %v99 = vld [vmem:[%s2 + $0x118] sm:$0xf]
    %v100 = vld [vmem:[%s2 + $0x11c] sm:$0xf]
    %v101 = vld [vmem:[%s2 + $0x120] sm:$0xf]
    %v102 = vld [vmem:[%s2 + $0x124] sm:$0xf]
    %v103 = vld [vmem:[%s2 + $0x128] sm:$0xf]
    %v104 = vld [vmem:[%s2 + $0x12c] sm:$0xf]
    %v105 = vld [vmem:[%s2 + $0x130] sm:$0xf]
    %v106 = vld [vmem:[%s2 + $0x134] sm:$0xf]
    %v107 = vld [vmem:[%s2 + $0x138] sm:$0xf]
    %v108 = vld [vmem:[%s2 + $0x13c] sm:$0xf]
    %v109 = vld [vmem:[%s2 + $0x140] sm:$0xf]
    %v110 = vld [vmem:[%s2 + $0x144] sm:$0xf]
    %v111 = vld [vmem:[%s2 + $0x148] sm:$0xf]
    %v112 = vld [vmem:[%s2 + $0x14c] sm:$0xf]
    %v113 = vld [vmem:[%s2 + $0x150] sm:$0xf]
    %v114 = vld [vmem:[%s2 + $0x154] sm:$0xf]
    %v115 = vld [vmem:[%s2 + $0x158] sm:$0xf]
    %v116 = vld [vmem:[%s2 + $0x15c] sm:$0xf]
    %v117 = vld [vmem:[%s2 + $0x160] sm:$0xf]
    %v118 = vld [vmem:[%s2 + $0x164] sm:$0xf]
    %v119 = vld [vmem:[%s2 + $0x168] sm:$0xf]
    %v120 = vld [vmem:[%s2 + $0x16c] sm:$0xf]
    %v121 = vld [vmem:[%s2 + $0x170] sm:$0xf]
    %v122 = vld [vmem:[%s2 + $0x174] sm:$0xf]
    %v123 = vld [vmem:[%s2 + $0x178] sm:$0xf]
    %v124 = vld [vmem:[%s2 + $0x17c] sm:$0xf]
    %v125 = vld [vmem:[%s2 + $0x180] sm:$0xf]
    %v126 = vld [vmem:[%s2 + $0x184] sm:$0xf]
    %v127 = vld [vmem:[%s2 + $0x188] sm:$0xf]
    %v128 = vld [vmem:[%s2 + $0x18c] sm:$0xf]
    %v129 = vld [vmem:[%s2 + $0x190] sm:$0xf]
    %v130 = vld [vmem:[%s2 + $0x194] sm:$0xf]
    %v131 = vld [vmem:[%s2 + $0x198] sm:$0xf]
    %v132 = vld [vmem:[%s2 + $0x19c] sm:$0xf]
    %v133 = vld [vmem:[%s2 + $0x1a0] sm:$0xf]
    %v134 = vld [vmem:[%s2 + $0x1a4] sm:$0xf]
    %v135 = vld [vmem:[%s2 + $0x1a8] sm:$0xf]
    %v136 = vld [vmem:[%s2 + $0x1ac] sm:$0xf]
    %v137 = vld [vmem:[%s2 + $0x1b0] sm:$0xf]
    %v138 = vld [vmem:[%s2 + $0x1b4] sm:$0xf]
    %v139 = vld [vmem:[%s2 + $0x1b8] sm:$0xf]
    %v140 = vld [vmem:[%s2 + $0x1bc] sm:$0xf]
    %v141 = vld [vmem:[%s2 + $0x1c0] sm:$0xf]
    %v142 = vld [vmem:[%s2 + $0x1c4] sm:$0xf]
    %v143 = vld [vmem:[%s2 + $0x1c8] sm:$0xf]
    %v144 = vld [vmem:[%s2 + $0x1cc] sm:$0xf]
    %v145 = vld [vmem:[%s2 + $0x1d0] sm:$0xf]
    %v146 = vld [vmem:[%s2 + $0x1d4] sm:$0xf]
    %v147 = vld [vmem:[%s2 + $0x1d8] sm:$0xf]
    %v148 = vld [vmem:[%s2 + $0x1dc] sm:$0xf]
    %v149 = vld [vmem:[%s2 + $0x1e0] sm:$0xf]
    %v150 = vld [vmem:[%s2 + $0x1e4] sm:$0xf]
    %v151 = vld [vmem:[%s2 + $0x1e8] sm:$0xf]
    %v152 = vld [vmem:[%s2 + $0x1ec] sm:$0xf]
    %v153 = vld [vmem:[%s2 + $0x1f0] sm:$0xf]
    %v154 = vld [vmem:[%s2 + $0x1f4] sm:$0xf]
    %v155 = vld [vmem:[%s2 + $0x1f8] sm:$0xf]
    %v156 = vld [vmem:[%s2 + $0x1fc] sm:$0xf]
    %v158 = vcombine.high %v28, %v28
    %v160 = vunpack.c.l.s4 1966171168
    %v161 = vunpack.c.0.s8 %v160
    %v162 = vlaneseq
    %v163 = vshrl.u32 %v162, 7
    %v164 = vsub.s32 %v161, %v163
    %v165 = vrot.slane %v28, %v164
    %v167 = vunpack.c.l.s4 1966171168
    %v168 = vunpack.c.0.s8 %v167
    %v169 = vlaneseq
    %v170 = vshrl.u32 %v169, 7
    %v171 = vsub.s32 %v168, %v170
    %v172 = vrot.slane %v158, %v171
    %v173 = vcombine.high %v165, %v165
    %v174 = vcombine.high %v172, %v172
    %v176 = vunpack.c.l.s4 1966171168
    %v177 = vunpack.c.0.s8 %v176
    %v178 = vlaneseq
    %v179 = vshrl.u32 %v178, 7
    %v180 = vsub.s32 %v177, %v179
    %v181 = vrot.slane %v165, %v180
    %v183 = vunpack.c.l.s4 1966171168
    %v184 = vunpack.c.0.s8 %v183
    %v185 = vlaneseq
    %v186 = vshrl.u32 %v185, 7
    %v187 = vsub.s32 %v184, %v186
    %v188 = vrot.slane %v172, %v187
    %v190 = vunpack.c.l.s4 1966171168
    %v191 = vunpack.c.0.s8 %v190
    %v192 = vlaneseq
    %v193 = vshrl.u32 %v192, 7
    %v194 = vsub.s32 %v191, %v193
    %v195 = vrot.slane %v173, %v194
    %v197 = vunpack.c.l.s4 1966171168
    %v198 = vunpack.c.0.s8 %v197
    %v199 = vlaneseq
    %v200 = vshrl.u32 %v199, 7
    %v201 = vsub.s32 %v198, %v200
    %v202 = vrot.slane %v174, %v201
    %v203 = vcombine.high %v181, %v181
    %v204 = vcombine.high %v188, %v188
    %v205 = vcombine.high %v195, %v195
    %v206 = vcombine.high %v202, %v202
    %v343 = vunpack.c.l.b16 %v29
    %v344 = vunpack.c.l.b16 %v30
    %v345 = vunpack.c.l.b16 %v31
    %v346 = vunpack.c.l.b16 %v32
    %v347 = vunpack.c.l.b16 %v33
    %v348 = vunpack.c.l.b16 %v34
    %v349 = vunpack.c.l.b16 %v35
    %v350 = vunpack.c.l.b16 %v36
    %v351 = vunpack.c.l.b16 %v37
    %v352 = vunpack.c.l.b16 %v38
    %v353 = vunpack.c.l.b16 %v39
    %v354 = vunpack.c.l.b16 %v40
    %v355 = vunpack.c.l.b16 %v41
    %v356 = vunpack.c.l.b16 %v42
    %v357 = vunpack.c.l.b16 %v43
    %v358 = vunpack.c.l.b16 %v44
    %v359 = vunpack.c.l.b16 %v45
    %v360 = vunpack.c.l.b16 %v46
    %v361 = vunpack.c.l.b16 %v47
    %v362 = vunpack.c.l.b16 %v48
    %v363 = vunpack.c.l.b16 %v49
    %v364 = vunpack.c.l.b16 %v50
    %v365 = vunpack.c.l.b16 %v51
    %v366 = vunpack.c.l.b16 %v52
    %v367 = vunpack.c.l.b16 %v53
    %v368 = vunpack.c.l.b16 %v54
    %v369 = vunpack.c.l.b16 %v55
    %v370 = vunpack.c.l.b16 %v56
    %v371 = vunpack.c.l.b16 %v57
    %v372 = vunpack.c.l.b16 %v58
    %v373 = vunpack.c.l.b16 %v59
    %v374 = vunpack.c.l.b16 %v60
    %v375 = vunpack.c.l.b16 %v61
    %v376 = vunpack.c.l.b16 %v62
    %v377 = vunpack.c.l.b16 %v63
    %v378 = vunpack.c.l.b16 %v64
    %v379 = vunpack.c.l.b16 %v65
    %v380 = vunpack.c.l.b16 %v66
    %v381 = vunpack.c.l.b16 %v67
    %v382 = vunpack.c.l.b16 %v68
    %v383 = vunpack.c.l.b16 %v69
    %v384 = vunpack.c.l.b16 %v70
    %v385 = vunpack.c.l.b16 %v71
    %v386 = vunpack.c.l.b16 %v72
    %v387 = vunpack.c.l.b16 %v73
    %v388 = vunpack.c.l.b16 %v74
    %v389 = vunpack.c.l.b16 %v75
    %v390 = vunpack.c.l.b16 %v76
    %v391 = vunpack.c.l.b16 %v77
    %v392 = vunpack.c.l.b16 %v78
    %v393 = vunpack.c.l.b16 %v79
    %v394 = vunpack.c.l.b16 %v80
    %v395 = vunpack.c.l.b16 %v81
    %v396 = vunpack.c.l.b16 %v82
    %v397 = vunpack.c.l.b16 %v83
    %v398 = vunpack.c.l.b16 %v84
    %v399 = vunpack.c.l.b16 %v85
    %v400 = vunpack.c.l.b16 %v86
    %v401 = vunpack.c.l.b16 %v87
    %v402 = vunpack.c.l.b16 %v88
    %v403 = vunpack.c.l.b16 %v89
    %v404 = vunpack.c.l.b16 %v90
    %v405 = vunpack.c.l.b16 %v91
    %v406 = vunpack.c.l.b16 %v92
    %v407 = vunpack.c.l.b16 %v93
    %v408 = vunpack.c.l.b16 %v94
    %v409 = vunpack.c.l.b16 %v95
    %v410 = vunpack.c.l.b16 %v96
    %v411 = vunpack.c.l.b16 %v97
    %v412 = vunpack.c.l.b16 %v98
    %v413 = vunpack.c.l.b16 %v99
    %v414 = vunpack.c.l.b16 %v100
    %v415 = vunpack.c.l.b16 %v101
    %v416 = vunpack.c.l.b16 %v102
    %v417 = vunpack.c.l.b16 %v103
    %v418 = vunpack.c.l.b16 %v104
    %v419 = vunpack.c.l.b16 %v105
    %v420 = vunpack.c.l.b16 %v106
    %v421 = vunpack.c.l.b16 %v107
    %v422 = vunpack.c.l.b16 %v108
    %v423 = vunpack.c.l.b16 %v109
    %v424 = vunpack.c.l.b16 %v110
    %v425 = vunpack.c.l.b16 %v111
    %v426 = vunpack.c.l.b16 %v112
    %v427 = vunpack.c.l.b16 %v113
    %v428 = vunpack.c.l.b16 %v114
    %v429 = vunpack.c.l.b16 %v115
    %v430 = vunpack.c.l.b16 %v116
    %v431 = vunpack.c.l.b16 %v117
    %v432 = vunpack.c.l.b16 %v118
    %v433 = vunpack.c.l.b16 %v119
    %v434 = vunpack.c.l.b16 %v120
    %v435 = vunpack.c.l.b16 %v121
    %v436 = vunpack.c.l.b16 %v122
    %v437 = vunpack.c.l.b16 %v123
    %v438 = vunpack.c.l.b16 %v124
    %v439 = vunpack.c.l.b16 %v125
    %v440 = vunpack.c.l.b16 %v126
    %v441 = vunpack.c.l.b16 %v127
    %v442 = vunpack.c.l.b16 %v128
    %v443 = vunpack.c.l.b16 %v129
    %v444 = vunpack.c.l.b16 %v130
    %v445 = vunpack.c.l.b16 %v131
    %v446 = vunpack.c.l.b16 %v132
    %v447 = vunpack.c.l.b16 %v133
    %v448 = vunpack.c.l.b16 %v134
    %v449 = vunpack.c.l.b16 %v135
    %v450 = vunpack.c.l.b16 %v136
    %v451 = vunpack.c.l.b16 %v137
    %v452 = vunpack.c.l.b16 %v138
    %v453 = vunpack.c.l.b16 %v139
    %v454 = vunpack.c.l.b16 %v140
    %v455 = vunpack.c.l.b16 %v141
    %v456 = vunpack.c.l.b16 %v142
    %v457 = vunpack.c.l.b16 %v143
    %v458 = vunpack.c.l.b16 %v144
    %v459 = vunpack.c.l.b16 %v145
    %v460 = vunpack.c.l.b16 %v146
    %v461 = vunpack.c.l.b16 %v147
    %v462 = vunpack.c.l.b16 %v148
    %v463 = vunpack.c.l.b16 %v149
    %v464 = vunpack.c.l.b16 %v150
    %v465 = vunpack.c.l.b16 %v151
    %v466 = vunpack.c.l.b16 %v152
    %v467 = vunpack.c.l.b16 %v153
    %v468 = vunpack.c.l.b16 %v154
    %v469 = vunpack.c.l.b16 %v155
    %v470 = vunpack.c.l.b16 %v156
    %v471 = vpack.c.b16 %v344, %v343
    %v472 = vpack.c.b16 %v346, %v345
    %v473 = vpack.c.b16 %v348, %v347
    %v474 = vpack.c.b16 %v350, %v349
    %v475 = vpack.c.b16 %v352, %v351
    %v476 = vpack.c.b16 %v354, %v353
    %v477 = vpack.c.b16 %v356, %v355
    %v478 = vpack.c.b16 %v358, %v357
    %v479 = vpack.c.b16 %v360, %v359
    %v480 = vpack.c.b16 %v362, %v361
    %v481 = vpack.c.b16 %v364, %v363
    %v482 = vpack.c.b16 %v366, %v365
    %v483 = vpack.c.b16 %v368, %v367
    %v484 = vpack.c.b16 %v370, %v369
    %v485 = vpack.c.b16 %v372, %v371
    %v486 = vpack.c.b16 %v374, %v373
    %v487 = vpack.c.b16 %v376, %v375
    %v488 = vpack.c.b16 %v378, %v377
    %v489 = vpack.c.b16 %v380, %v379
    %v490 = vpack.c.b16 %v382, %v381
    %v491 = vpack.c.b16 %v384, %v383
    %v492 = vpack.c.b16 %v386, %v385
    %v493 = vpack.c.b16 %v388, %v387
    %v494 = vpack.c.b16 %v390, %v389
    %v495 = vpack.c.b16 %v392, %v391
    %v496 = vpack.c.b16 %v394, %v393
    %v497 = vpack.c.b16 %v396, %v395
    %v498 = vpack.c.b16 %v398, %v397
    %v499 = vpack.c.b16 %v400, %v399
    %v500 = vpack.c.b16 %v402, %v401
    %v501 = vpack.c.b16 %v404, %v403
    %v502 = vpack.c.b16 %v406, %v405
    %v503 = vpack.c.b16 %v408, %v407
    %v504 = vpack.c.b16 %v410, %v409
    %v505 = vpack.c.b16 %v412, %v411
    %v506 = vpack.c.b16 %v414, %v413
    %v507 = vpack.c.b16 %v416, %v415
    %v508 = vpack.c.b16 %v418, %v417
    %v509 = vpack.c.b16 %v420, %v419
    %v510 = vpack.c.b16 %v422, %v421
    %v511 = vpack.c.b16 %v424, %v423
    %v512 = vpack.c.b16 %v426, %v425
    %v513 = vpack.c.b16 %v428, %v427
    %v514 = vpack.c.b16 %v430, %v429
    %v515 = vpack.c.b16 %v432, %v431
    %v516 = vpack.c.b16 %v434, %v433
    %v517 = vpack.c.b16 %v436, %v435
    %v518 = vpack.c.b16 %v438, %v437
    %v519 = vpack.c.b16 %v440, %v439
    %v520 = vpack.c.b16 %v442, %v441
    %v521 = vpack.c.b16 %v444, %v443
    %v522 = vpack.c.b16 %v446, %v445
    %v523 = vpack.c.b16 %v448, %v447
    %v524 = vpack.c.b16 %v450, %v449
    %v525 = vpack.c.b16 %v452, %v451
    %v526 = vpack.c.b16 %v454, %v453
    %v527 = vpack.c.b16 %v456, %v455
    %v528 = vpack.c.b16 %v458, %v457
    %v529 = vpack.c.b16 %v460, %v459
    %v530 = vpack.c.b16 %v462, %v461
    %v531 = vpack.c.b16 %v464, %v463
    %v532 = vpack.c.b16 %v466, %v465
    %v533 = vpack.c.b16 %v468, %v467
    %v534 = vpack.c.b16 %v470, %v469
    %599 = vmatprep.subr.bf16.mxu0 0
    %600 = vmatpush1.bf16.msra.mxu0 %v471
    %601 = vmatprep.subr.bf16.mxu0 0
    %602 = vmatpush1.bf16.msra.mxu0 %v472
    %603 = vmatprep.subr.bf16.mxu0 0
    %604 = vmatpush1.bf16.msra.mxu0 %v473
    %605 = vmatprep.subr.bf16.mxu0 0
    %606 = vmatpush1.bf16.msra.mxu0 %v474
    %607 = vmatprep.subr.bf16.mxu0 0
    %608 = vmatpush1.bf16.msra.mxu0 %v475
    %609 = vmatprep.subr.bf16.mxu0 0
    %610 = vmatpush1.bf16.msra.mxu0 %v476
    %611 = vmatprep.subr.bf16.mxu0 0
    %612 = vmatpush1.bf16.msra.mxu0 %v477
    %613 = vmatprep.subr.bf16.mxu0 0
    %614 = vmatpush1.bf16.msra.mxu0 %v478
    %615 = vmatprep.subr.bf16.mxu0 0
    %616 = vmatpush1.bf16.msra.mxu0 %v479
    %617 = vmatprep.subr.bf16.mxu0 0
    %618 = vmatpush1.bf16.msra.mxu0 %v480
    %619 = vmatprep.subr.bf16.mxu0 0
    %620 = vmatpush1.bf16.msra.mxu0 %v481
    %621 = vmatprep.subr.bf16.mxu0 0
    %622 = vmatpush1.bf16.msra.mxu0 %v482
    %623 = vmatprep.subr.bf16.mxu0 0
    %624 = vmatpush1.bf16.msra.mxu0 %v483
    %625 = vmatprep.subr.bf16.mxu0 0
    %626 = vmatpush1.bf16.msra.mxu0 %v484
    %627 = vmatprep.subr.bf16.mxu0 0
    %628 = vmatpush1.bf16.msra.mxu0 %v485
    %629 = vmatprep.subr.bf16.mxu0 0
    %630 = vmatpush1.bf16.msra.mxu0 %v486
    %631 = vmatprep.mubr.bf16.mxu0 %v195
    %632 = vmatmul.mubr.bf16.gmra.mrb[0].mxu0 %v181
    %v633 = vpop.f32.mrb[0].mxu0
    %v634 = vadd.f32 0.0, %v633
    %v635 = vpop.f32.mrb[0].mxu0
    %v636 = vpop.f32.mrb[0].mxu0
    %v637 = vpop.f32.mrb[0].mxu0
    %638 = vdwg.mxu0
    %639 = vmatprep.subr.bf16.mxu0 0
    %640 = vmatpush1.bf16.msra.mxu0 %v487
    %641 = vmatprep.subr.bf16.mxu0 0
    %642 = vmatpush1.bf16.msra.mxu0 %v488
    %643 = vmatprep.subr.bf16.mxu0 0
    %644 = vmatpush1.bf16.msra.mxu0 %v489
    %645 = vmatprep.subr.bf16.mxu0 0
    %646 = vmatpush1.bf16.msra.mxu0 %v490
    %647 = vmatprep.subr.bf16.mxu0 0
    %648 = vmatpush1.bf16.msra.mxu0 %v491
    %649 = vmatprep.subr.bf16.mxu0 0
    %650 = vmatpush1.bf16.msra.mxu0 %v492
    %651 = vmatprep.subr.bf16.mxu0 0
    %652 = vmatpush1.bf16.msra.mxu0 %v493
    %653 = vmatprep.subr.bf16.mxu0 0
    %654 = vmatpush1.bf16.msra.mxu0 %v494
    %655 = vmatprep.subr.bf16.mxu0 0
    %656 = vmatpush1.bf16.msra.mxu0 %v495
    %657 = vmatprep.subr.bf16.mxu0 0
    %658 = vmatpush1.bf16.msra.mxu0 %v496
    %659 = vmatprep.subr.bf16.mxu0 0
    %660 = vmatpush1.bf16.msra.mxu0 %v497
    %661 = vmatprep.subr.bf16.mxu0 0
    %662 = vmatpush1.bf16.msra.mxu0 %v498
    %663 = vmatprep.subr.bf16.mxu0 0
    %664 = vmatpush1.bf16.msra.mxu0 %v499
    %665 = vmatprep.subr.bf16.mxu0 0
    %666 = vmatpush1.bf16.msra.mxu0 %v500
    %667 = vmatprep.subr.bf16.mxu0 0
    %668 = vmatpush1.bf16.msra.mxu0 %v501
    %669 = vmatprep.subr.bf16.mxu0 0
    %670 = vmatpush1.bf16.msra.mxu0 %v502
    %671 = vmatprep.mubr.bf16.mxu0 %v205
    %672 = vmatmul.mubr.bf16.gmra.mrb[0].mxu0 %v203
    %v673 = vpop.f32.mrb[0].mxu0
    %v674 = vadd.f32 %v634, %v673
    %v675 = vpop.f32.mrb[0].mxu0
    %v676 = vpop.f32.mrb[0].mxu0
    %v677 = vpop.f32.mrb[0].mxu0
    %678 = vdwg.mxu0
    %679 = vmatprep.subr.bf16.mxu0 0
    %680 = vmatpush1.bf16.msra.mxu0 %v503
    %681 = vmatprep.subr.bf16.mxu0 0
    %682 = vmatpush1.bf16.msra.mxu0 %v504
    %683 = vmatprep.subr.bf16.mxu0 0
    %684 = vmatpush1.bf16.msra.mxu0 %v505
    %685 = vmatprep.subr.bf16.mxu0 0
    %686 = vmatpush1.bf16.msra.mxu0 %v506
    %687 = vmatprep.subr.bf16.mxu0 0
    %688 = vmatpush1.bf16.msra.mxu0 %v507
    %689 = vmatprep.subr.bf16.mxu0 0
    %690 = vmatpush1.bf16.msra.mxu0 %v508
    %691 = vmatprep.subr.bf16.mxu0 0
    %692 = vmatpush1.bf16.msra.mxu0 %v509
    %693 = vmatprep.subr.bf16.mxu0 0
    %694 = vmatpush1.bf16.msra.mxu0 %v510
    %695 = vmatprep.subr.bf16.mxu0 0
    %696 = vmatpush1.bf16.msra.mxu0 %v511
    %697 = vmatprep.subr.bf16.mxu0 0
    %698 = vmatpush1.bf16.msra.mxu0 %v512
    %699 = vmatprep.subr.bf16.mxu0 0
    %700 = vmatpush1.bf16.msra.mxu0 %v513
    %701 = vmatprep.subr.bf16.mxu0 0
    %702 = vmatpush1.bf16.msra.mxu0 %v514
    %703 = vmatprep.subr.bf16.mxu0 0
    %704 = vmatpush1.bf16.msra.mxu0 %v515
    %705 = vmatprep.subr.bf16.mxu0 0
    %706 = vmatpush1.bf16.msra.mxu0 %v516
    %707 = vmatprep.subr.bf16.mxu0 0
    %708 = vmatpush1.bf16.msra.mxu0 %v517
    %709 = vmatprep.subr.bf16.mxu0 0
    %710 = vmatpush1.bf16.msra.mxu0 %v518
    %711 = vmatprep.mubr.bf16.mxu0 %v202
    %712 = vmatmul.mubr.bf16.gmra.mrb[0].mxu0 %v188
    %v713 = vpop.f32.mrb[0].mxu0
    %v714 = vadd.f32 %v674, %v713
    %v715 = vpop.f32.mrb[0].mxu0
    %v716 = vpop.f32.mrb[0].mxu0
    %v717 = vpop.f32.mrb[0].mxu0
    %718 = vdwg.mxu0
    %719 = vmatprep.subr.bf16.mxu0 0
    %720 = vmatpush1.bf16.msra.mxu0 %v519
    %721 = vmatprep.subr.bf16.mxu0 0
    %722 = vmatpush1.bf16.msra.mxu0 %v520
    %723 = vmatprep.subr.bf16.mxu0 0
    %724 = vmatpush1.bf16.msra.mxu0 %v521
    %725 = vmatprep.subr.bf16.mxu0 0
    %726 = vmatpush1.bf16.msra.mxu0 %v522
    %727 = vmatprep.subr.bf16.mxu0 0
    %728 = vmatpush1.bf16.msra.mxu0 %v523
    %729 = vmatprep.subr.bf16.mxu0 0
    %730 = vmatpush1.bf16.msra.mxu0 %v524
    %731 = vmatprep.subr.bf16.mxu0 0
    %732 = vmatpush1.bf16.msra.mxu0 %v525
    %733 = vmatprep.subr.bf16.mxu0 0
    %734 = vmatpush1.bf16.msra.mxu0 %v526
    %735 = vmatprep.subr.bf16.mxu0 0
    %736 = vmatpush1.bf16.msra.mxu0 %v527
    %737 = vmatprep.subr.bf16.mxu0 0
    %738 = vmatpush1.bf16.msra.mxu0 %v528
    %739 = vmatprep.subr.bf16.mxu0 0
    %740 = vmatpush1.bf16.msra.mxu0 %v529
    %741 = vmatprep.subr.bf16.mxu0 0
    %742 = vmatpush1.bf16.msra.mxu0 %v530
    %743 = vmatprep.subr.bf16.mxu0 0
    %744 = vmatpush1.bf16.msra.mxu0 %v531
    %745 = vmatprep.subr.bf16.mxu0 0
    %746 = vmatpush1.bf16.msra.mxu0 %v532
    %747 = vmatprep.subr.bf16.mxu0 0
    %748 = vmatpush1.bf16.msra.mxu0 %v533
    %749 = vmatprep.subr.bf16.mxu0 0
    %750 = vmatpush1.bf16.msra.mxu0 %v534
    %751 = vmatprep.mubr.bf16.mxu0 %v206
    %752 = vmatmul.mubr.bf16.gmra.mrb[0].mxu0 %v204
    %v753 = vpop.f32.mrb[0].mxu0
    %v754 = vadd.f32 %v714, %v753
    %v755 = vpop.f32.mrb[0].mxu0
    %v756 = vpop.f32.mrb[0].mxu0
    %v757 = vpop.f32.mrb[0].mxu0
    %758 = vdwg.mxu0
    %v759 = vmul.f32 %v754, 0.00390625
    %v760 = vld [vmem:[%s1] sm:$0x3]
    %v761 = vld [vmem:[%s3] sm:$0x1]
    %763 = vset.pattern.permute.xlu0 0
    %764 = vperm.xlu0 %763, %v760
    %v765 = vpop.permute.xlu0 %764
    %v768 = vlaneseq
    %v769 = vshrl.u32 %v768, 7
    %v770 = vsub.s32 0, %v769
    %v771 = vrot.slane %v761, %v770
    %v773 = vmul.f32 %v765, %v771
    %v774 = vadd.f32 %v759, %v773
    %v775 = vld [vmem:[%s4] sm:$0x1]
    %v777 = vlaneseq
    %v778 = vshrl.u32 %v777, 7
    %v779 = vsub.s32 0, %v778
    %v780 = vrot.slane %v775, %v779
    %v782 = vadd.f32 %v774, %v780
    %v783 = vmax.f32 %v782, 0.0
    %v784 = vld [vmem:[%s5] sm:$0xff]
    %v785 = vld [vmem:[%s5 + $0x8] sm:$0xff]
    %v786 = vld [vmem:[%s5 + $0x10] sm:$0xff]
    %v787 = vld [vmem:[%s5 + $0x18] sm:$0xff]
    %v788 = vld [vmem:[%s6] sm:$0x1]
    %v790 = vlaneseq
    %v791 = vshrl.u32 %v790, 7
    %v792 = vsub.s32 0, %v791
    %v793 = vrot.slane %v788, %v792
    %vm795 = vcmask 261120
    %v797 = vsel %vm795, %v783, 0
    %799 = vmatprep.subr.mxu0 0.0
    %v800 = vand.u32 %v784, 4294901760
    %801 = vmatpush1.msra.mxu0 %v800
    %802 = vmatprep.subr.mxu0 0.0
    %v803 = vand.u32 %v785, 4294901760
    %804 = vmatpush1.msra.mxu0 %v803
    %805 = vmatprep.subr.mxu0 0.0
    %v806 = vand.u32 %v786, 4294901760
    %807 = vmatpush1.msra.mxu0 %v806
    %808 = vmatprep.subr.mxu0 0.0
    %v809 = vand.u32 %v787, 4294901760
    %810 = vmatpush1.msra.mxu0 %v809
    %811 = vmatprep.subr.mxu0 0.0
    %812 = vmatpush1.msra.mxu0 0.0
    %813 = vmatprep.subr.mxu0 0.0
    %814 = vmatpush1.msra.mxu0 0.0
    %815 = vmatprep.subr.mxu0 0.0
    %816 = vmatpush1.msra.mxu0 0.0
    %817 = vmatprep.subr.mxu0 0.0
    %818 = vmatpush1.msra.mxu0 0.0
    %819 = vmatprep.subr.mxu0 0.0
    %820 = vmatpush1.msra.mxu0 0.0
    %821 = vmatprep.subr.mxu0 0.0
    %822 = vmatpush1.msra.mxu0 0.0
    %823 = vmatprep.subr.mxu0 0.0
    %824 = vmatpush1.msra.mxu0 0.0
    %825 = vmatprep.subr.mxu0 0.0
    %826 = vmatpush1.msra.mxu0 0.0
    %827 = vmatprep.subr.mxu0 0.0
    %828 = vmatpush1.msra.mxu0 0.0
    %829 = vmatprep.subr.mxu0 0.0
    %830 = vmatpush1.msra.mxu0 0.0
    %831 = vmatprep.subr.mxu0 0.0
    %832 = vmatpush1.msra.mxu0 0.0
    %833 = vmatprep.subr.mxu0 0.0
    %834 = vmatpush1.msra.mxu0 0.0
    %835 = vmatprep.subr.mxu0 0.0
    %836 = vmatpush1.msra.mxu0 0.0
    %837 = vmatprep.subr.mxu0 0.0
    %838 = vmatpush1.msra.mxu0 0.0
    %839 = vmatprep.subr.mxu0 0.0
    %840 = vmatpush1.msra.mxu0 0.0
    %841 = vmatprep.subr.mxu0 0.0
    %842 = vmatpush1.msra.mxu0 0.0
    %843 = vmatprep.subr.mxu0 0.0
    %844 = vmatpush1.msra.mxu0 0.0
    %845 = vmatprep.subr.mxu0 0.0
    %846 = vmatpush1.msra.mxu0 0.0
    %847 = vmatprep.subr.mxu0 0.0
    %848 = vmatpush1.msra.mxu0 0.0
    %849 = vmatprep.subr.mxu0 0.0
    %850 = vmatpush1.msra.mxu0 0.0
    %851 = vmatprep.subr.mxu0 0.0
    %852 = vmatpush1.msra.mxu0 0.0
    %853 = vmatprep.subr.mxu0 0.0
    %854 = vmatpush1.msra.mxu0 0.0
    %855 = vmatprep.subr.mxu0 0.0
    %856 = vmatpush1.msra.mxu0 0.0
    %857 = vmatprep.subr.mxu0 0.0
    %858 = vmatpush1.msra.mxu0 0.0
    %859 = vmatprep.subr.mxu0 0.0
    %860 = vmatpush1.msra.mxu0 0.0
    %861 = vmatprep.subr.mxu0 0.0
    %862 = vmatpush1.msra.mxu0 0.0
    %863 = vmatprep.subr.mxu0 0.0
    %864 = vmatpush1.msra.mxu0 0.0
    %865 = vmatprep.subr.mxu0 0.0
    %866 = vmatpush1.msra.mxu0 0.0
    %867 = vmatprep.mubr.f32.mxu0 0.0
    %v868 = vand.u32 %v797, 4294901760
    %v869 = vsub.f32 %v797, %v868
    %v870 = vand.u32 %v869, 4294901760
    %v871 = vsub.f32 %v869, %v870
    %v872 = vand.u32 %v871, 4294901760
    %873 = vmatmul.mubr.f32.gmra.mrb[0].mxu0 %v872
    %v874 = vpop.f32.mrb[0].mxu0
    %v875 = vadd.f32 %v793, %v874
    %v876 = vpop.f32.mrb[0].mxu0
    %877 = vdwg.mxu0
    %878 = vmatprep.subr.mxu0 0.0
    %v879 = vand.u32 %v784, 4294901760
    %v880 = vsub.f32 %v784, %v879
    %v881 = vand.u32 %v880, 4294901760
    %v882 = vsub.f32 %v880, %v881
    %v883 = vand.u32 %v882, 4294901760
    %884 = vmatpush1.msra.mxu0 %v883
    %885 = vmatprep.subr.mxu0 0.0
    %v886 = vand.u32 %v785, 4294901760
    %v887 = vsub.f32 %v785, %v886
    %v888 = vand.u32 %v887, 4294901760
    %v889 = vsub.f32 %v887, %v888
    %v890 = vand.u32 %v889, 4294901760
    %891 = vmatpush1.msra.mxu0 %v890
    %892 = vmatprep.subr.mxu0 0.0
    %v893 = vand.u32 %v786, 4294901760
    %v894 = vsub.f32 %v786, %v893
    %v895 = vand.u32 %v894, 4294901760
    %v896 = vsub.f32 %v894, %v895
    %v897 = vand.u32 %v896, 4294901760
    %898 = vmatpush1.msra.mxu0 %v897
    %899 = vmatprep.subr.mxu0 0.0
    %v900 = vand.u32 %v787, 4294901760
    %v901 = vsub.f32 %v787, %v900
    %v902 = vand.u32 %v901, 4294901760
    %v903 = vsub.f32 %v901, %v902
    %v904 = vand.u32 %v903, 4294901760
    %905 = vmatpush1.msra.mxu0 %v904
    %906 = vmatprep.subr.mxu0 0.0
    %907 = vmatpush1.msra.mxu0 0.0
    %908 = vmatprep.subr.mxu0 0.0
    %909 = vmatpush1.msra.mxu0 0.0
    %910 = vmatprep.subr.mxu0 0.0
    %911 = vmatpush1.msra.mxu0 0.0
    %912 = vmatprep.subr.mxu0 0.0
    %913 = vmatpush1.msra.mxu0 0.0
    %914 = vmatprep.subr.mxu0 0.0
    %915 = vmatpush1.msra.mxu0 0.0
    %916 = vmatprep.subr.mxu0 0.0
    %917 = vmatpush1.msra.mxu0 0.0
    %918 = vmatprep.subr.mxu0 0.0
    %919 = vmatpush1.msra.mxu0 0.0
    %920 = vmatprep.subr.mxu0 0.0
    %921 = vmatpush1.msra.mxu0 0.0
    %922 = vmatprep.subr.mxu0 0.0
    %923 = vmatpush1.msra.mxu0 0.0
    %924 = vmatprep.subr.mxu0 0.0
    %925 = vmatpush1.msra.mxu0 0.0
    %926 = vmatprep.subr.mxu0 0.0
    %927 = vmatpush1.msra.mxu0 0.0
    %928 = vmatprep.subr.mxu0 0.0
    %929 = vmatpush1.msra.mxu0 0.0
    %930 = vmatprep.subr.mxu0 0.0
    %931 = vmatpush1.msra.mxu0 0.0
    %932 = vmatprep.subr.mxu0 0.0
    %933 = vmatpush1.msra.mxu0 0.0
    %934 = vmatprep.subr.mxu0 0.0
    %935 = vmatpush1.msra.mxu0 0.0
    %936 = vmatprep.subr.mxu0 0.0
    %937 = vmatpush1.msra.mxu0 0.0
    %938 = vmatprep.subr.mxu0 0.0
    %939 = vmatpush1.msra.mxu0 0.0
    %940 = vmatprep.subr.mxu0 0.0
    %941 = vmatpush1.msra.mxu0 0.0
    %942 = vmatprep.subr.mxu0 0.0
    %943 = vmatpush1.msra.mxu0 0.0
    %944 = vmatprep.subr.mxu0 0.0
    %945 = vmatpush1.msra.mxu0 0.0
    %946 = vmatprep.subr.mxu0 0.0
    %947 = vmatpush1.msra.mxu0 0.0
    %948 = vmatprep.subr.mxu0 0.0
    %949 = vmatpush1.msra.mxu0 0.0
    %950 = vmatprep.subr.mxu0 0.0
    %951 = vmatpush1.msra.mxu0 0.0
    %952 = vmatprep.subr.mxu0 0.0
    %953 = vmatpush1.msra.mxu0 0.0
    %954 = vmatprep.subr.mxu0 0.0
    %955 = vmatpush1.msra.mxu0 0.0
    %956 = vmatprep.subr.mxu0 0.0
    %957 = vmatpush1.msra.mxu0 0.0
    %958 = vmatprep.subr.mxu0 0.0
    %959 = vmatpush1.msra.mxu0 0.0
    %960 = vmatprep.subr.mxu0 0.0
    %961 = vmatpush1.msra.mxu0 0.0
    %962 = vmatprep.mubr.f32.mxu0 0.0
    %v963 = vand.u32 %v797, 4294901760
    %964 = vmatmul.mubr.f32.gmra.mrb[0].mxu0 %v963
    %v965 = vpop.f32.mrb[0].mxu0
    %v966 = vadd.f32 %v875, %v965
    %v967 = vpop.f32.mrb[0].mxu0
    %968 = vdwg.mxu0
    %969 = vmatprep.subr.mxu0 0.0
    %v970 = vand.u32 %v784, 4294901760
    %v971 = vsub.f32 %v784, %v970
    %972 = vmatpush1.msra.mxu0 %v971
    %973 = vmatprep.subr.mxu0 0.0
    %v974 = vand.u32 %v785, 4294901760
    %v975 = vsub.f32 %v785, %v974
    %976 = vmatpush1.msra.mxu0 %v975
    %977 = vmatprep.subr.mxu0 0.0
    %v978 = vand.u32 %v786, 4294901760
    %v979 = vsub.f32 %v786, %v978
    %980 = vmatpush1.msra.mxu0 %v979
    %981 = vmatprep.subr.mxu0 0.0
    %v982 = vand.u32 %v787, 4294901760
    %v983 = vsub.f32 %v787, %v982
    %984 = vmatpush1.msra.mxu0 %v983
    %985 = vmatprep.subr.mxu0 0.0
    %986 = vmatpush1.msra.mxu0 0.0
    %987 = vmatprep.subr.mxu0 0.0
    %988 = vmatpush1.msra.mxu0 0.0
    %989 = vmatprep.subr.mxu0 0.0
    %990 = vmatpush1.msra.mxu0 0.0
    %991 = vmatprep.subr.mxu0 0.0
    %992 = vmatpush1.msra.mxu0 0.0
    %993 = vmatprep.subr.mxu0 0.0
    %994 = vmatpush1.msra.mxu0 0.0
    %995 = vmatprep.subr.mxu0 0.0
    %996 = vmatpush1.msra.mxu0 0.0
    %997 = vmatprep.subr.mxu0 0.0
    %998 = vmatpush1.msra.mxu0 0.0
    %999 = vmatprep.subr.mxu0 0.0
    %1000 = vmatpush1.msra.mxu0 0.0
    %1001 = vmatprep.subr.mxu0 0.0
    %1002 = vmatpush1.msra.mxu0 0.0
    %1003 = vmatprep.subr.mxu0 0.0
    %1004 = vmatpush1.msra.mxu0 0.0
    %1005 = vmatprep.subr.mxu0 0.0
    %1006 = vmatpush1.msra.mxu0 0.0
    %1007 = vmatprep.subr.mxu0 0.0
    %1008 = vmatpush1.msra.mxu0 0.0
    %1009 = vmatprep.subr.mxu0 0.0
    %1010 = vmatpush1.msra.mxu0 0.0
    %1011 = vmatprep.subr.mxu0 0.0
    %1012 = vmatpush1.msra.mxu0 0.0
    %1013 = vmatprep.subr.mxu0 0.0
    %1014 = vmatpush1.msra.mxu0 0.0
    %1015 = vmatprep.subr.mxu0 0.0
    %1016 = vmatpush1.msra.mxu0 0.0
    %1017 = vmatprep.subr.mxu0 0.0
    %1018 = vmatpush1.msra.mxu0 0.0
    %1019 = vmatprep.subr.mxu0 0.0
    %1020 = vmatpush1.msra.mxu0 0.0
    %1021 = vmatprep.subr.mxu0 0.0
    %1022 = vmatpush1.msra.mxu0 0.0
    %1023 = vmatprep.subr.mxu0 0.0
    %1024 = vmatpush1.msra.mxu0 0.0
    %1025 = vmatprep.subr.mxu0 0.0
    %1026 = vmatpush1.msra.mxu0 0.0
    %1027 = vmatprep.subr.mxu0 0.0
    %1028 = vmatpush1.msra.mxu0 0.0
    %1029 = vmatprep.subr.mxu0 0.0
    %1030 = vmatpush1.msra.mxu0 0.0
    %1031 = vmatprep.subr.mxu0 0.0
    %1032 = vmatpush1.msra.mxu0 0.0
    %1033 = vmatprep.subr.mxu0 0.0
    %1034 = vmatpush1.msra.mxu0 0.0
    %1035 = vmatprep.subr.mxu0 0.0
    %1036 = vmatpush1.msra.mxu0 0.0
    %1037 = vmatprep.subr.mxu0 0.0
    %1038 = vmatpush1.msra.mxu0 0.0
    %1039 = vmatprep.subr.mxu0 0.0
    %1040 = vmatpush1.msra.mxu0 0.0
    %1041 = vmatprep.mubr.f32.mxu0 0.0
    %v1042 = vand.u32 %v797, 4294901760
    %v1043 = vsub.f32 %v797, %v1042
    %1044 = vmatmul.mubr.f32.gmra.mrb[0].mxu0 %v1043
    %v1045 = vpop.f32.mrb[0].mxu0
    %v1046 = vadd.f32 %v966, %v1045
    %v1047 = vpop.f32.mrb[0].mxu0
    %1048 = vdwg.mxu0
    %1049 = vmatprep.subr.mxu0 0.0
    %v1050 = vand.u32 %v784, 4294901760
    %1051 = vmatpush1.msra.mxu0 %v1050
    %1052 = vmatprep.subr.mxu0 0.0
    %v1053 = vand.u32 %v785, 4294901760
    %1054 = vmatpush1.msra.mxu0 %v1053
    %1055 = vmatprep.subr.mxu0 0.0
    %v1056 = vand.u32 %v786, 4294901760
    %1057 = vmatpush1.msra.mxu0 %v1056
    %1058 = vmatprep.subr.mxu0 0.0
    %v1059 = vand.u32 %v787, 4294901760
    %1060 = vmatpush1.msra.mxu0 %v1059
    %1061 = vmatprep.subr.mxu0 0.0
    %1062 = vmatpush1.msra.mxu0 0.0
    %1063 = vmatprep.subr.mxu0 0.0
    %1064 = vmatpush1.msra.mxu0 0.0
    %1065 = vmatprep.subr.mxu0 0.0
    %1066 = vmatpush1.msra.mxu0 0.0
    %1067 = vmatprep.subr.mxu0 0.0
    %1068 = vmatpush1.msra.mxu0 0.0
    %1069 = vmatprep.subr.mxu0 0.0
    %1070 = vmatpush1.msra.mxu0 0.0
    %1071 = vmatprep.subr.mxu0 0.0
    %1072 = vmatpush1.msra.mxu0 0.0
    %1073 = vmatprep.subr.mxu0 0.0
    %1074 = vmatpush1.msra.mxu0 0.0
    %1075 = vmatprep.subr.mxu0 0.0
    %1076 = vmatpush1.msra.mxu0 0.0
    %1077 = vmatprep.subr.mxu0 0.0
    %1078 = vmatpush1.msra.mxu0 0.0
    %1079 = vmatprep.subr.mxu0 0.0
    %1080 = vmatpush1.msra.mxu0 0.0
    %1081 = vmatprep.subr.mxu0 0.0
    %1082 = vmatpush1.msra.mxu0 0.0
    %1083 = vmatprep.subr.mxu0 0.0
    %1084 = vmatpush1.msra.mxu0 0.0
    %1085 = vmatprep.subr.mxu0 0.0
    %1086 = vmatpush1.msra.mxu0 0.0
    %1087 = vmatprep.subr.mxu0 0.0
    %1088 = vmatpush1.msra.mxu0 0.0
    %1089 = vmatprep.subr.mxu0 0.0
    %1090 = vmatpush1.msra.mxu0 0.0
    %1091 = vmatprep.subr.mxu0 0.0
    %1092 = vmatpush1.msra.mxu0 0.0
    %1093 = vmatprep.subr.mxu0 0.0
    %1094 = vmatpush1.msra.mxu0 0.0
    %1095 = vmatprep.subr.mxu0 0.0
    %1096 = vmatpush1.msra.mxu0 0.0
    %1097 = vmatprep.subr.mxu0 0.0
    %1098 = vmatpush1.msra.mxu0 0.0
    %1099 = vmatprep.subr.mxu0 0.0
    %1100 = vmatpush1.msra.mxu0 0.0
    %1101 = vmatprep.subr.mxu0 0.0
    %1102 = vmatpush1.msra.mxu0 0.0
    %1103 = vmatprep.subr.mxu0 0.0
    %1104 = vmatpush1.msra.mxu0 0.0
    %1105 = vmatprep.subr.mxu0 0.0
    %1106 = vmatpush1.msra.mxu0 0.0
    %1107 = vmatprep.subr.mxu0 0.0
    %1108 = vmatpush1.msra.mxu0 0.0
    %1109 = vmatprep.subr.mxu0 0.0
    %1110 = vmatpush1.msra.mxu0 0.0
    %1111 = vmatprep.subr.mxu0 0.0
    %1112 = vmatpush1.msra.mxu0 0.0
    %1113 = vmatprep.subr.mxu0 0.0
    %1114 = vmatpush1.msra.mxu0 0.0
    %1115 = vmatprep.subr.mxu0 0.0
    %1116 = vmatpush1.msra.mxu0 0.0
    %1117 = vmatprep.mubr.f32.mxu0 0.0
    %v1118 = vand.u32 %v797, 4294901760
    %v1119 = vsub.f32 %v797, %v1118
    %v1120 = vand.u32 %v1119, 4294901760
    %1121 = vmatmul.mubr.f32.gmra.mrb[0].mxu0 %v1120
    %v1122 = vpop.f32.mrb[0].mxu0
    %v1123 = vadd.f32 %v1046, %v1122
    %v1124 = vpop.f32.mrb[0].mxu0
    %1125 = vdwg.mxu0
    %1126 = vmatprep.subr.mxu0 0.0
    %v1127 = vand.u32 %v784, 4294901760
    %v1128 = vsub.f32 %v784, %v1127
    %v1129 = vand.u32 %v1128, 4294901760
    %1130 = vmatpush1.msra.mxu0 %v1129
    %1131 = vmatprep.subr.mxu0 0.0
    %v1132 = vand.u32 %v785, 4294901760
    %v1133 = vsub.f32 %v785, %v1132
    %v1134 = vand.u32 %v1133, 4294901760
    %1135 = vmatpush1.msra.mxu0 %v1134
    %1136 = vmatprep.subr.mxu0 0.0
    %v1137 = vand.u32 %v786, 4294901760
    %v1138 = vsub.f32 %v786, %v1137
    %v1139 = vand.u32 %v1138, 4294901760
    %1140 = vmatpush1.msra.mxu0 %v1139
    %1141 = vmatprep.subr.mxu0 0.0
    %v1142 = vand.u32 %v787, 4294901760
    %v1143 = vsub.f32 %v787, %v1142
    %v1144 = vand.u32 %v1143, 4294901760
    %1145 = vmatpush1.msra.mxu0 %v1144
    %1146 = vmatprep.subr.mxu0 0.0
    %1147 = vmatpush1.msra.mxu0 0.0
    %1148 = vmatprep.subr.mxu0 0.0
    %1149 = vmatpush1.msra.mxu0 0.0
    %1150 = vmatprep.subr.mxu0 0.0
    %1151 = vmatpush1.msra.mxu0 0.0
    %1152 = vmatprep.subr.mxu0 0.0
    %1153 = vmatpush1.msra.mxu0 0.0
    %1154 = vmatprep.subr.mxu0 0.0
    %1155 = vmatpush1.msra.mxu0 0.0
    %1156 = vmatprep.subr.mxu0 0.0
    %1157 = vmatpush1.msra.mxu0 0.0
    %1158 = vmatprep.subr.mxu0 0.0
    %1159 = vmatpush1.msra.mxu0 0.0
    %1160 = vmatprep.subr.mxu0 0.0
    %1161 = vmatpush1.msra.mxu0 0.0
    %1162 = vmatprep.subr.mxu0 0.0
    %1163 = vmatpush1.msra.mxu0 0.0
    %1164 = vmatprep.subr.mxu0 0.0
    %1165 = vmatpush1.msra.mxu0 0.0
    %1166 = vmatprep.subr.mxu0 0.0
    %1167 = vmatpush1.msra.mxu0 0.0
    %1168 = vmatprep.subr.mxu0 0.0
    %1169 = vmatpush1.msra.mxu0 0.0
    %1170 = vmatprep.subr.mxu0 0.0
    %1171 = vmatpush1.msra.mxu0 0.0
    %1172 = vmatprep.subr.mxu0 0.0
    %1173 = vmatpush1.msra.mxu0 0.0
    %1174 = vmatprep.subr.mxu0 0.0
    %1175 = vmatpush1.msra.mxu0 0.0
    %1176 = vmatprep.subr.mxu0 0.0
    %1177 = vmatpush1.msra.mxu0 0.0
    %1178 = vmatprep.subr.mxu0 0.0
    %1179 = vmatpush1.msra.mxu0 0.0
    %1180 = vmatprep.subr.mxu0 0.0
    %1181 = vmatpush1.msra.mxu0 0.0
    %1182 = vmatprep.subr.mxu0 0.0
    %1183 = vmatpush1.msra.mxu0 0.0
    %1184 = vmatprep.subr.mxu0 0.0
    %1185 = vmatpush1.msra.mxu0 0.0
    %1186 = vmatprep.subr.mxu0 0.0
    %1187 = vmatpush1.msra.mxu0 0.0
    %1188 = vmatprep.subr.mxu0 0.0
    %1189 = vmatpush1.msra.mxu0 0.0
    %1190 = vmatprep.subr.mxu0 0.0
    %1191 = vmatpush1.msra.mxu0 0.0
    %1192 = vmatprep.subr.mxu0 0.0
    %1193 = vmatpush1.msra.mxu0 0.0
    %1194 = vmatprep.subr.mxu0 0.0
    %1195 = vmatpush1.msra.mxu0 0.0
    %1196 = vmatprep.subr.mxu0 0.0
    %1197 = vmatpush1.msra.mxu0 0.0
    %1198 = vmatprep.subr.mxu0 0.0
    %1199 = vmatpush1.msra.mxu0 0.0
    %1200 = vmatprep.subr.mxu0 0.0
    %1201 = vmatpush1.msra.mxu0 0.0
    %1202 = vmatprep.mubr.f32.mxu0 0.0
    %v1203 = vand.u32 %v797, 4294901760
    %1204 = vmatmul.mubr.f32.gmra.mrb[0].mxu0 %v1203
    %v1205 = vpop.f32.mrb[0].mxu0
    %v1206 = vadd.f32 %v1123, %v1205
    %v1207 = vpop.f32.mrb[0].mxu0
    %1208 = vdwg.mxu0
    %1209 = vmatprep.subr.mxu0 0.0
    %v1210 = vand.u32 %v784, 4294901760
    %1211 = vmatpush1.msra.mxu0 %v1210
    %1212 = vmatprep.subr.mxu0 0.0
    %v1213 = vand.u32 %v785, 4294901760
    %1214 = vmatpush1.msra.mxu0 %v1213
    %1215 = vmatprep.subr.mxu0 0.0
    %v1216 = vand.u32 %v786, 4294901760
    %1217 = vmatpush1.msra.mxu0 %v1216
    %1218 = vmatprep.subr.mxu0 0.0
    %v1219 = vand.u32 %v787, 4294901760
    %1220 = vmatpush1.msra.mxu0 %v1219
    %1221 = vmatprep.subr.mxu0 0.0
    %1222 = vmatpush1.msra.mxu0 0.0
    %1223 = vmatprep.subr.mxu0 0.0
    %1224 = vmatpush1.msra.mxu0 0.0
    %1225 = vmatprep.subr.mxu0 0.0
    %1226 = vmatpush1.msra.mxu0 0.0
    %1227 = vmatprep.subr.mxu0 0.0
    %1228 = vmatpush1.msra.mxu0 0.0
    %1229 = vmatprep.subr.mxu0 0.0
    %1230 = vmatpush1.msra.mxu0 0.0
    %1231 = vmatprep.subr.mxu0 0.0
    %1232 = vmatpush1.msra.mxu0 0.0
    %1233 = vmatprep.subr.mxu0 0.0
    %1234 = vmatpush1.msra.mxu0 0.0
    %1235 = vmatprep.subr.mxu0 0.0
    %1236 = vmatpush1.msra.mxu0 0.0
    %1237 = vmatprep.subr.mxu0 0.0
    %1238 = vmatpush1.msra.mxu0 0.0
    %1239 = vmatprep.subr.mxu0 0.0
    %1240 = vmatpush1.msra.mxu0 0.0
    %1241 = vmatprep.subr.mxu0 0.0
    %1242 = vmatpush1.msra.mxu0 0.0
    %1243 = vmatprep.subr.mxu0 0.0
    %1244 = vmatpush1.msra.mxu0 0.0
    %1245 = vmatprep.subr.mxu0 0.0
    %1246 = vmatpush1.msra.mxu0 0.0
    %1247 = vmatprep.subr.mxu0 0.0
    %1248 = vmatpush1.msra.mxu0 0.0
    %1249 = vmatprep.subr.mxu0 0.0
    %1250 = vmatpush1.msra.mxu0 0.0
    %1251 = vmatprep.subr.mxu0 0.0
    %1252 = vmatpush1.msra.mxu0 0.0
    %1253 = vmatprep.subr.mxu0 0.0
    %1254 = vmatpush1.msra.mxu0 0.0
    %1255 = vmatprep.subr.mxu0 0.0
    %1256 = vmatpush1.msra.mxu0 0.0
    %1257 = vmatprep.subr.mxu0 0.0
    %1258 = vmatpush1.msra.mxu0 0.0
    %1259 = vmatprep.subr.mxu0 0.0
    %1260 = vmatpush1.msra.mxu0 0.0
    %1261 = vmatprep.subr.mxu0 0.0
    %1262 = vmatpush1.msra.mxu0 0.0
    %1263 = vmatprep.subr.mxu0 0.0
    %1264 = vmatpush1.msra.mxu0 0.0
    %1265 = vmatprep.subr.mxu0 0.0
    %1266 = vmatpush1.msra.mxu0 0.0
    %1267 = vmatprep.subr.mxu0 0.0
    %1268 = vmatpush1.msra.mxu0 0.0
    %1269 = vmatprep.subr.mxu0 0.0
    %1270 = vmatpush1.msra.mxu0 0.0
    %1271 = vmatprep.subr.mxu0 0.0
    %1272 = vmatpush1.msra.mxu0 0.0
    %1273 = vmatprep.subr.mxu0 0.0
    %1274 = vmatpush1.msra.mxu0 0.0
    %1275 = vmatprep.subr.mxu0 0.0
    %1276 = vmatpush1.msra.mxu0 0.0
    %1277 = vmatprep.mubr.f32.mxu0 0.0
    %v1278 = vand.u32 %v797, 4294901760
    %1279 = vmatmul.mubr.f32.gmra.mrb[0].mxu0 %v1278
    %v1280 = vpop.f32.mrb[0].mxu0
    %v1281 = vadd.f32 %v1206, %v1280
    %v1282 = vpop.f32.mrb[0].mxu0
    %1283 = vdwg.mxu0
    %vm1284 = vcmask 58368
    %v1285 = vsel %vm1284, %v1281, -inf
    %1286 = vmax.xlane.f32.xlu0 %v1285
    %v1287 = vpop.xlane.xlu0 %1286
    %v1288 = vsub.f32 %v1281, %v1287
    %v1289 = vmul.f32 %v1288, 1.442695
    %v1290 = vpow.pop %v1289
    %v1291 = vsel %vm1284, %v1290, 0.0
    %1292 = vadd.xlane.f32.xlu0 %v1291
    %v1293 = vpop.xlane.xlu0 %1292
    %v1294 = vrcp.pop %v1293
    %v1295 = vmul.f32 %v1290, %v1294
    %1296 = vst.msk [vmem:[#allocation2] sm:$0x3] %vm1284, %v1295
    // Predicated region
    $region30: #{tpu_custom_call.1} parent=1 // pred_check
      _
    $region31: #{tpu_custom_call.1} parent=1 // pred_check_branch
      %1298 = sbr.rel (0) target = $region33
    $region32: #{tpu_custom_call.1} parent=1 // pred_region
      %s1300 = ssub.s32 32, 32
      %1301 = vsyncadd [#allocation3], %s1300
      %s1303 = sshll.u32 [#allocation2], 4
      %s1304 = int_to_ptr.vmem [resolvable:$true] %s1303
      %1306 = dma.vmem_to_hbm [thread:$0]  %s1304, 32, %s7, [#allocation3]
    $region33: #{tpu_custom_call.1} parent=1 // pred_fallthru
      _
    // Predicated region
    $region34: #{tpu_custom_call.1} parent=1 // pred_check
      _
    $region35: #{tpu_custom_call.1} parent=1 // pred_check_branch
      %1308 = sbr.rel (0) target = $region37
    $region36: #{tpu_custom_call.1} parent=1 // pred_region
      %1309 = dma.done [#allocation3], 32
    $region37: #{tpu_custom_call.1} parent=1 // pred_fallthru
      _
    %1310 = vsyncpa [#allocation3], 1

</llo_original>
